<compile_context>
chip_gen: v6e
topology: v6e:2x2x1
jax: 0.10.0
libtpu: 0.0.40
codegen_flags: <defaults>
</compile_context>

<pallas_src>
import jax
import jax.numpy as jnp
from jax.experimental import pallas as pl
from jax.experimental.pallas import tpu as pltpu


def embed_mlp_kernel(idx_ref, emb_ref, w1_ref, b1_ref, w2_ref, b2_ref, out_ref):
    C = idx_ref.shape[0]          # context size (static)

    # --- embedding lookup: C dynamic row reads (indices come from SMEM) ---
    # Each read is a (1, E) slice; lane-concatenation reproduces torch's .view(1, -1)
    # flatten order, giving the flattened activation without any sublane->lane reshape.
    rows = [emb_ref[pl.ds(idx_ref[c], 1), :] for c in range(C)]      # C x (1, E) f32
    x_flat = jnp.concatenate(rows, axis=1)                           # (1, C*E) f32

    # --- linear1: single MXU contraction, K = C*E (bf16 operands, f32 accumulate) ---
    h = jnp.dot(x_flat.astype(w1_ref.dtype), w1_ref[...],
                preferred_element_type=jnp.float32) + b1_ref[...]    # (1, H) f32
    h = jnp.maximum(h, 0.0)                                          # ReLU (f32, VPU)

    # --- linear2: (1, H) @ (H, Vp) + b2  (Vp = lane-padded vocab) ---
    logits = jnp.dot(h.astype(w2_ref.dtype), w2_ref[...],
                     preferred_element_type=jnp.float32) + b2_ref[...]   # (1, Vp) f32

    # --- log_softmax along dim=1 (padded lanes carry -1e30 bias -> exp underflows to 0) ---
    m = jnp.max(logits, axis=-1, keepdims=True)
    lse = jnp.log(jnp.sum(jnp.exp(logits - m), axis=-1, keepdims=True)) + m
    out_ref[...] = logits - lse


def embed_forward(indices, emb_table, w1, b1, w2, b2):
    """indices: (C,) int; emb_table: (V, E) f32; w1: (C*E, H); b1: (H,);
    w2: (H, V); b2: (V,).  Returns (1, V) float32 log-probs (matches PyTorch forward)."""
    C = indices.shape[0]
    V, E = emb_table.shape
    H = w1.shape[1]
    LANE = 128
    Vp = max(LANE, ((V + LANE - 1) // LANE) * LANE)   # lane-dense padded vocab

    # glue: clamp indices (PyTorch would raise on OOB; dynamic reads must stay in-range)
    idx = jnp.clip(indices.astype(jnp.int32), 0, V - 1)              # (C,) -> SMEM

    emb_f32 = emb_table.astype(jnp.float32)                          # (V, E) gather source
    w1_bf = w1.astype(jnp.bfloat16)                                  # (C*E, H) MXU operand
    b1r = b1.reshape(1, H).astype(jnp.float32)

    # pad vocab dim to 128 lanes; padded logits get a huge negative bias so the
    # softmax normalizer ignores them.
    w2_pad = jnp.zeros((H, Vp), jnp.float32).at[:, :V].set(w2).astype(jnp.bfloat16)
    b2_pad = jnp.full((1, Vp), -1e30, jnp.float32).at[0, :V].set(b2.astype(jnp.float32))

    out = pl.pallas_call(
        embed_mlp_kernel,
        out_shape=jax.ShapeDtypeStruct((1, Vp), jnp.float32),
        in_specs=[
            pl.BlockSpec(memory_space=pltpu.MemorySpace.SMEM),   # token indices
            pl.BlockSpec(memory_space=pltpu.MemorySpace.VMEM),   # embedding table
            pl.BlockSpec(memory_space=pltpu.MemorySpace.VMEM),   # w1 (bf16)
            pl.BlockSpec(memory_space=pltpu.MemorySpace.VMEM),   # b1 (f32)
            pl.BlockSpec(memory_space=pltpu.MemorySpace.VMEM),   # w2 padded (bf16)
            pl.BlockSpec(memory_space=pltpu.MemorySpace.VMEM),   # b2 padded (f32)
        ],
        out_specs=pl.BlockSpec(memory_space=pltpu.MemorySpace.VMEM),
    )(idx, emb_f32, w1_bf, b1r, w2_pad, b2_pad)

    return out[:, :V]


def ref_forward(indices, emb_table, w1, b1, w2, b2):
    embeds = emb_table[indices].reshape(1, -1)
    h = jnp.maximum(embeds @ w1 + b1, 0.0)
    logits = h @ w2 + b2
    return jax.nn.log_softmax(logits, axis=1)


if __name__ == "__main__":
    vocab_size, embed_dim, context_size, hidden = 64, 32, 8, 128

    key = jax.random.PRNGKey(0)
    k_idx, k_emb, k_w1, k_b1, k_w2, k_b2 = jax.random.split(key, 6)

    indices = jax.random.randint(k_idx, (context_size,), 0, vocab_size, dtype=jnp.int32)
    emb_table = jax.random.normal(k_emb, (vocab_size, embed_dim), jnp.float32) * 0.1
    w1 = jax.random.normal(k_w1, (context_size * embed_dim, hidden), jnp.float32) * 0.05
    b1 = jax.random.normal(k_b1, (hidden,), jnp.float32) * 0.01
    w2 = jax.random.normal(k_w2, (hidden, vocab_size), jnp.float32) * 0.05
    b2 = jax.random.normal(k_b2, (vocab_size,), jnp.float32) * 0.01

    out = embed_forward(indices, emb_table, w1, b1, w2, b2)
    out = jax.block_until_ready(out)

    ref = ref_forward(indices, emb_table, w1, b1, w2, b2)
    assert out.shape == (1, vocab_size)
    # matmul operands are bf16 (f32 accumulation), so allow a bf16-sized tolerance
    # against the full-f32 reference.
    assert jnp.allclose(out, ref, atol=2e-2, rtol=2e-2), "mismatch vs reference"

    print("KERNEL_OK")
</pallas_src>

<mosaic_0001>
module attributes {stable_mosaic.version = 11 : i64} {
  func.func @embed_mlp_kernel(%arg0: memref<8xi32, #tpu.memory_space<smem>>, %arg1: memref<64x32xf32, #tpu.memory_space<vmem>>, %arg2: memref<256x128xbf16, #tpu.memory_space<vmem>>, %arg3: memref<1x128xf32, #tpu.memory_space<vmem>>, %arg4: memref<128x128xbf16, #tpu.memory_space<vmem>>, %arg5: memref<1x128xf32, #tpu.memory_space<vmem>>, %arg6: memref<1x128xf32, #tpu.memory_space<vmem>>) attributes {dimension_semantics = [], scalar_prefetch = 0 : i64, scratch_operands = 0 : i64, tpu.core_type = #tpu.core_type<tc>} {
    %c0 = arith.constant 0 : index
    %0 = memref.load %arg0[%c0] : memref<8xi32, #tpu.memory_space<smem>>
    %1 = arith.index_cast %0 : i32 to index
    %c0_0 = arith.constant 0 : index
    %2 = vector.load %arg1[%1, %c0_0] : memref<64x32xf32, #tpu.memory_space<vmem>>, vector<1x32xf32>
    %c1 = arith.constant 1 : index
    %3 = memref.load %arg0[%c1] : memref<8xi32, #tpu.memory_space<smem>>
    %4 = arith.index_cast %3 : i32 to index
    %c0_1 = arith.constant 0 : index
    %5 = vector.load %arg1[%4, %c0_1] : memref<64x32xf32, #tpu.memory_space<vmem>>, vector<1x32xf32>
    %c2 = arith.constant 2 : index
    %6 = memref.load %arg0[%c2] : memref<8xi32, #tpu.memory_space<smem>>
    %7 = arith.index_cast %6 : i32 to index
    %c0_2 = arith.constant 0 : index
    %8 = vector.load %arg1[%7, %c0_2] : memref<64x32xf32, #tpu.memory_space<vmem>>, vector<1x32xf32>
    %c3 = arith.constant 3 : index
    %9 = memref.load %arg0[%c3] : memref<8xi32, #tpu.memory_space<smem>>
    %10 = arith.index_cast %9 : i32 to index
    %c0_3 = arith.constant 0 : index
    %11 = vector.load %arg1[%10, %c0_3] : memref<64x32xf32, #tpu.memory_space<vmem>>, vector<1x32xf32>
    %c4 = arith.constant 4 : index
    %12 = memref.load %arg0[%c4] : memref<8xi32, #tpu.memory_space<smem>>
    %13 = arith.index_cast %12 : i32 to index
    %c0_4 = arith.constant 0 : index
    %14 = vector.load %arg1[%13, %c0_4] : memref<64x32xf32, #tpu.memory_space<vmem>>, vector<1x32xf32>
    %c5 = arith.constant 5 : index
    %15 = memref.load %arg0[%c5] : memref<8xi32, #tpu.memory_space<smem>>
    %16 = arith.index_cast %15 : i32 to index
    %c0_5 = arith.constant 0 : index
    %17 = vector.load %arg1[%16, %c0_5] : memref<64x32xf32, #tpu.memory_space<vmem>>, vector<1x32xf32>
    %c6 = arith.constant 6 : index
    %18 = memref.load %arg0[%c6] : memref<8xi32, #tpu.memory_space<smem>>
    %19 = arith.index_cast %18 : i32 to index
    %c0_6 = arith.constant 0 : index
    %20 = vector.load %arg1[%19, %c0_6] : memref<64x32xf32, #tpu.memory_space<vmem>>, vector<1x32xf32>
    %c7 = arith.constant 7 : index
    %21 = memref.load %arg0[%c7] : memref<8xi32, #tpu.memory_space<smem>>
    %22 = arith.index_cast %21 : i32 to index
    %c0_7 = arith.constant 0 : index
    %23 = vector.load %arg1[%22, %c0_7] : memref<64x32xf32, #tpu.memory_space<vmem>>, vector<1x32xf32>
    %24 = tpu.concatenate %2, %5, %8, %11, %14, %17, %20, %23 in 1 : vector<1x32xf32>, vector<1x32xf32>, vector<1x32xf32>, vector<1x32xf32>, vector<1x32xf32>, vector<1x32xf32>, vector<1x32xf32>, vector<1x32xf32> -> vector<1x256xf32>
    %25 = arith.truncf %24 : vector<1x256xf32> to vector<1x256xbf16>
    %c0_8 = arith.constant 0 : index
    %c0_9 = arith.constant 0 : index
    %26 = vector.load %arg2[%c0_8, %c0_9] : memref<256x128xbf16, #tpu.memory_space<vmem>>, vector<256x128xbf16>
    %cst = arith.constant dense<0.000000e+00> : vector<1x128xf32>
    %27 = tpu.matmul %25, %26, %cst {dimension_numbers = #tpu.dot_dimension_numbers<[1], [0], [0], [1], [0, 0, 1, 1], [], []>} : vector<1x256xbf16>, vector<256x128xbf16>, vector<1x128xf32> -> vector<1x128xf32>
    %c0_10 = arith.constant 0 : index
    %c0_11 = arith.constant 0 : index
    %28 = vector.load %arg3[%c0_10, %c0_11] : memref<1x128xf32, #tpu.memory_space<vmem>>, vector<1x128xf32>
    %29 = arith.addf %27, %28 : vector<1x128xf32>
    %cst_12 = arith.constant 0.000000e+00 : f32
    %30 = vector.broadcast %cst_12 : f32 to vector<1x128xf32>
    %31 = arith.maximumf %29, %30 : vector<1x128xf32>
    %32 = arith.truncf %31 : vector<1x128xf32> to vector<1x128xbf16>
    %c0_13 = arith.constant 0 : index
    %c0_14 = arith.constant 0 : index
    %33 = vector.load %arg4[%c0_13, %c0_14] : memref<128x128xbf16, #tpu.memory_space<vmem>>, vector<128x128xbf16>
    %cst_15 = arith.constant dense<0.000000e+00> : vector<1x128xf32>
    %34 = tpu.matmul %32, %33, %cst_15 {dimension_numbers = #tpu.dot_dimension_numbers<[1], [0], [0], [1], [0, 0, 1, 1], [], []>} : vector<1x128xbf16>, vector<128x128xbf16>, vector<1x128xf32> -> vector<1x128xf32>
    %c0_16 = arith.constant 0 : index
    %c0_17 = arith.constant 0 : index
    %35 = vector.load %arg5[%c0_16, %c0_17] : memref<1x128xf32, #tpu.memory_space<vmem>>, vector<1x128xf32>
    %36 = arith.addf %34, %35 : vector<1x128xf32>
    %cst_18 = arith.constant dense<0xFF800000> : vector<1xf32>
    %37 = vector.multi_reduction <maximumf>, %36, %cst_18 [1] : vector<1x128xf32> to vector<1xf32>
    %38 = vector.shape_cast %37 : vector<1xf32> to vector<1x1xf32>
    %39 = vector.broadcast %38 : vector<1x1xf32> to vector<1x128xf32>
    %40 = arith.subf %36, %39 : vector<1x128xf32>
    %41 = math.exp %40 : vector<1x128xf32>
    %cst_19 = arith.constant dense<0.000000e+00> : vector<1xf32>
    %42 = vector.multi_reduction <add>, %41, %cst_19 [1] : vector<1x128xf32> to vector<1xf32>
    %43 = vector.shape_cast %42 : vector<1xf32> to vector<1x1xf32>
    %44 = math.log %43 : vector<1x1xf32>
    %45 = arith.addf %44, %38 : vector<1x1xf32>
    %46 = vector.broadcast %45 : vector<1x1xf32> to vector<1x128xf32>
    %47 = arith.subf %36, %46 : vector<1x128xf32>
    %c0_20 = arith.constant 0 : index
    %c0_21 = arith.constant 0 : index
    %48 = vector.load %arg6[%c0_20, %c0_21] : memref<1x128xf32, #tpu.memory_space<vmem>>, vector<1x128xf32>
    tpu.vector_store %arg6[%c0_20, %c0_21], %47 {strides = array<i32>} : memref<1x128xf32, #tpu.memory_space<vmem>>, vector<1x128xf32>,
    return
  }
}

</mosaic_0001>

<llo_original>
// kernel: tpu_custom_call.1
$region0: #{tpu_custom_call.1}
  #allocation0 [shape = 'u32[]', space=smem, size = 0x4, offset = 0x4, fixed_abs, tag = 'smem constant byte address 0x4 - core index']
  #allocation1 [shape = 'u32[144,128]{1,0:T(1,128)}', space=vmem, size = 0x12000, scoped, tag = 'internal scratch']
  %s0 = inlined_call_operand.vmem [shape: s32[8], index: 0, kind: input, shape index: {}]
  %s1 = inlined_call_operand.vmem [shape: f32[64,32], index: 1, kind: input, shape index: {}]
  %s2 = inlined_call_operand.hbm [shape: bf16[256,128], index: 2, kind: input, shape index: {}]
  %s3 = inlined_call_operand.vmem [shape: f32[1,128], index: 3, kind: input, shape index: {}]
  %s4 = inlined_call_operand.vmem [shape: bf16[128,128], index: 4, kind: input, shape index: {}]
  %s5 = inlined_call_operand.vmem [shape: f32[1,128], index: 5, kind: input, shape index: {}]
  %s6 = inlined_call_operand.hbm [shape: f32[1,128], index: 6, kind: output, shape index: {}]
  %s7 = sld [smem:[#allocation0]]
  $region42: #{tpu_custom_call.1} parent=0
    _
  %s9 = ssub.s32 1, %s7
  %s10 = scalar_select 0, %s9, %s7
  $region1: #{tpu_custom_call.1} parent=0
    #allocation2 [shape = 'u8[512]{0}', space=smem, size = 0x200, scoped, tag = 'input window, operand 0, single buffered']
    #allocation3 [shape = 's32[1]{0}', space=sflag, size = 0x4, scoped, tag = 'scoped memory for tpu_custom_call.1']
    #allocation4 [shape = 's32[1]{0}', space=sflag, size = 0x4, scoped, tag = 'scoped memory for tpu_custom_call.1']
    #allocation5 [shape = 's32[1]{0}', space=sflag, size = 0x4, scoped, tag = 'scoped memory for tpu_custom_call.1']
    #allocation6 [shape = 'u8[65536]{0}', space=vmem, size = 0x10000, scoped, tag = 'input window, operand 2, single buffered']
    #allocation7 [shape = 'u8[512]{0}', space=vmem, size = 0x400, scoped, tag = 'output window, operand 0, single buffered']
    %11 = vsyncpa [#allocation5], 0
    %12 = vsyncpa [#allocation3], 0
    %13 = vsyncpa [#allocation4], 0
    // Predicated region
    $region2: #{tpu_custom_call.1} parent=1 // pred_check
      _
    $region3: #{tpu_custom_call.1} parent=1 // pred_check_branch
      %15 = sbr.rel (0) target = $region5
    $region4: #{tpu_custom_call.1} parent=1 // pred_region
      %s17 = ssub.s32 16, 16
      %18 = vsyncadd [#allocation5], %s17
      %s20 = sshll.u32 %s0, 4
      %s21 = int_to_ptr.vmem [resolvable:$true] %s20
      %23 = dma.vmem_to_smem %s21, 16, [#allocation2], [#allocation5]
    $region5: #{tpu_custom_call.1} parent=1 // pred_fallthru
      _
    // Predicated region
    $region6: #{tpu_custom_call.1} parent=1 // pred_check
      _
    $region7: #{tpu_custom_call.1} parent=1 // pred_check_branch
      %25 = sbr.rel (0) target = $region9
    $region8: #{tpu_custom_call.1} parent=1 // pred_region
      _
    $region9: #{tpu_custom_call.1} parent=1 // pred_fallthru
      _
    // Predicated region
    $region10: #{tpu_custom_call.1} parent=1 // pred_check
      _
    $region11: #{tpu_custom_call.1} parent=1 // pred_check_branch
      %27 = sbr.rel (0) target = $region13
    $region12: #{tpu_custom_call.1} parent=1 // pred_region
      %s29 = ssub.s32 2048, 2048
      %30 = vsyncadd [#allocation3], %s29
      %s31 = sshll.u32 [#allocation6], 4
      %s32 = int_to_ptr.vmem [resolvable:$true] %s31
      %37 = dma.hbm_to_vmem [thread:$0]  %s2, 2048, %s32, [#allocation3], 64, 64, 4
    $region13: #{tpu_custom_call.1} parent=1 // pred_fallthru
      _
    // Predicated region
    $region14: #{tpu_custom_call.1} parent=1 // pred_check
      _
    $region15: #{tpu_custom_call.1} parent=1 // pred_check_branch
      %39 = sbr.rel (0) target = $region17
    $region16: #{tpu_custom_call.1} parent=1 // pred_region
      _
    $region17: #{tpu_custom_call.1} parent=1 // pred_fallthru
      _
    // Predicated region
    $region18: #{tpu_custom_call.1} parent=1 // pred_check
      _
    $region19: #{tpu_custom_call.1} parent=1 // pred_check_branch
      %41 = sbr.rel (0) target = $region21
    $region20: #{tpu_custom_call.1} parent=1 // pred_region
      _
    $region21: #{tpu_custom_call.1} parent=1 // pred_fallthru
      _
    // Predicated region
    $region22: #{tpu_custom_call.1} parent=1 // pred_check
      _
    $region23: #{tpu_custom_call.1} parent=1 // pred_check_branch
      %43 = sbr.rel (0) target = $region25
    $region24: #{tpu_custom_call.1} parent=1 // pred_region
      _
    $region25: #{tpu_custom_call.1} parent=1 // pred_fallthru
      _
    // Predicated region
    $region26: #{tpu_custom_call.1} parent=1 // pred_check
      _
    $region27: #{tpu_custom_call.1} parent=1 // pred_check_branch
      %45 = sbr.rel (0) target = $region29
    $region28: #{tpu_custom_call.1} parent=1 // pred_region
      %46 = dma.done [#allocation5], 16
    $region29: #{tpu_custom_call.1} parent=1 // pred_fallthru
      _
    // Predicated region
    $region30: #{tpu_custom_call.1} parent=1 // pred_check
      _
    $region31: #{tpu_custom_call.1} parent=1 // pred_check_branch
      %48 = sbr.rel (0) target = $region33
    $region32: #{tpu_custom_call.1} parent=1 // pred_region
      %49 = dma.done [#allocation3], 2048
    $region33: #{tpu_custom_call.1} parent=1 // pred_fallthru
      _
    %50 = sfence
    %s52 = sld [smem:[#allocation2]]
    %s53 = scalar_lea.vmem %s1, %s52
    %v54 = vld [vmem:[%s53] sm:$0x1]
    %s55 = sld [smem:[#allocation2 + $0x1]]
    %s56 = scalar_lea.vmem %s1, %s55
    %v57 = vld [vmem:[%s56] sm:$0x1]
    %s58 = sld [smem:[#allocation2 + $0x2]]
    %s59 = scalar_lea.vmem %s1, %s58
    %v60 = vld [vmem:[%s59] sm:$0x1]
    %s61 = sld [smem:[#allocation2 + $0x3]]
    %s62 = scalar_lea.vmem %s1, %s61
    %v63 = vld [vmem:[%s62] sm:$0x1]
    %s64 = sld [smem:[#allocation2 + $0x4]]
    %s65 = scalar_lea.vmem %s1, %s64
    %v66 = vld [vmem:[%s65] sm:$0x1]
    %s67 = sld [smem:[#allocation2 + $0x5]]
    %s68 = scalar_lea.vmem %s1, %s67
    %v69 = vld [vmem:[%s68] sm:$0x1]
    %s70 = sld [smem:[#allocation2 + $0x6]]
    %s71 = scalar_lea.vmem %s1, %s70
    %v72 = vld [vmem:[%s71] sm:$0x1]
    %s73 = sld [smem:[#allocation2 + $0x7]]
    %s74 = scalar_lea.vmem %s1, %s73
    %v75 = vld [vmem:[%s74] sm:$0x1]
    %77 = vrot.lane.b32.xlu0 %v57, 32
    %v78 = vpop.permute.xlu0 %77
    %81 = vrot.lane.b32.xlu0 %v60, 64
    %v82 = vpop.permute.xlu0 %81
    %85 = vrot.lane.b32.xlu0 %v63, 96
    %v86 = vpop.permute.xlu0 %85
    %89 = vrot.lane.b32.xlu0 %v69, 32
    %v90 = vpop.permute.xlu0 %89
    %93 = vrot.lane.b32.xlu0 %v72, 64
    %v94 = vpop.permute.xlu0 %93
    %97 = vrot.lane.b32.xlu0 %v75, 96
    %v98 = vpop.permute.xlu0 %97
    %vm100 = vcmask 261120
    %v101 = vsel %vm100, %v54, %v78
    %vm102 = vcmask 523264
    %v103 = vsel %vm102, %v101, %v82
    %vm104 = vcmask 785408
    %v105 = vsel %vm104, %v103, %v86
    %v106 = vsel %vm100, %v66, %v90
    %v107 = vsel %vm102, %v106, %v94
    %v108 = vsel %vm104, %v107, %v98
    %v109 = vpack.c.bf16 %v105, %v105
    %v110 = vpack.c.bf16 %v108, %v108
    %v111 = vld [vmem:[#allocation6] sm:$0xf]
    %v112 = vld [vmem:[#allocation6 + $0x4] sm:$0xf]
    %v113 = vld [vmem:[#allocation6 + $0x8] sm:$0xf]
    %v114 = vld [vmem:[#allocation6 + $0xc] sm:$0xf]
    %v115 = vld [vmem:[#allocation6 + $0x10] sm:$0xf]
    %v116 = vld [vmem:[#allocation6 + $0x14] sm:$0xf]
    %v117 = vld [vmem:[#allocation6 + $0x18] sm:$0xf]
    %v118 = vld [vmem:[#allocation6 + $0x1c] sm:$0xf]
    %v119 = vld [vmem:[#allocation6 + $0x20] sm:$0xf]
    %v120 = vld [vmem:[#allocation6 + $0x24] sm:$0xf]
    %v121 = vld [vmem:[#allocation6 + $0x28] sm:$0xf]
    %v122 = vld [vmem:[#allocation6 + $0x2c] sm:$0xf]
    %v123 = vld [vmem:[#allocation6 + $0x30] sm:$0xf]
    %v124 = vld [vmem:[#allocation6 + $0x34] sm:$0xf]
    %v125 = vld [vmem:[#allocation6 + $0x38] sm:$0xf]
    %v126 = vld [vmem:[#allocation6 + $0x3c] sm:$0xf]
    %v127 = vld [vmem:[#allocation6 + $0x40] sm:$0xf]
    %v128 = vld [vmem:[#allocation6 + $0x44] sm:$0xf]
    %v129 = vld [vmem:[#allocation6 + $0x48] sm:$0xf]
    %v130 = vld [vmem:[#allocation6 + $0x4c] sm:$0xf]
    %v131 = vld [vmem:[#allocation6 + $0x50] sm:$0xf]
    %v132 = vld [vmem:[#allocation6 + $0x54] sm:$0xf]
    %v133 = vld [vmem:[#allocation6 + $0x58] sm:$0xf]
    %v134 = vld [vmem:[#allocation6 + $0x5c] sm:$0xf]
    %v135 = vld [vmem:[#allocation6 + $0x60] sm:$0xf]
    %v136 = vld [vmem:[#allocation6 + $0x64] sm:$0xf]
    %v137 = vld [vmem:[#allocation6 + $0x68] sm:$0xf]
    %v138 = vld [vmem:[#allocation6 + $0x6c] sm:$0xf]
    %v139 = vld [vmem:[#allocation6 + $0x70] sm:$0xf]
    %v140 = vld [vmem:[#allocation6 + $0x74] sm:$0xf]
    %v141 = vld [vmem:[#allocation6 + $0x78] sm:$0xf]
    %v142 = vld [vmem:[#allocation6 + $0x7c] sm:$0xf]
    %v143 = vld [vmem:[%s3] sm:$0x1]
    %v176 = vunpack.c.l.b16 %v111
    %v177 = vunpack.c.l.b16 %v112
    %v178 = vunpack.c.l.b16 %v113
    %v179 = vunpack.c.l.b16 %v114
    %v180 = vunpack.c.l.b16 %v115
    %v181 = vunpack.c.l.b16 %v116
    %v182 = vunpack.c.l.b16 %v117
    %v183 = vunpack.c.l.b16 %v118
    %v184 = vunpack.c.l.b16 %v119
    %v185 = vunpack.c.l.b16 %v120
    %v186 = vunpack.c.l.b16 %v121
    %v187 = vunpack.c.l.b16 %v122
    %v188 = vunpack.c.l.b16 %v123
    %v189 = vunpack.c.l.b16 %v124
    %v190 = vunpack.c.l.b16 %v125
    %v191 = vunpack.c.l.b16 %v126
    %v192 = vunpack.c.l.b16 %v127
    %v193 = vunpack.c.l.b16 %v128
    %v194 = vunpack.c.l.b16 %v129
    %v195 = vunpack.c.l.b16 %v130
    %v196 = vunpack.c.l.b16 %v131
    %v197 = vunpack.c.l.b16 %v132
    %v198 = vunpack.c.l.b16 %v133
    %v199 = vunpack.c.l.b16 %v134
    %v200 = vunpack.c.l.b16 %v135
    %v201 = vunpack.c.l.b16 %v136
    %v202 = vunpack.c.l.b16 %v137
    %v203 = vunpack.c.l.b16 %v138
    %v204 = vunpack.c.l.b16 %v139
    %v205 = vunpack.c.l.b16 %v140
    %v206 = vunpack.c.l.b16 %v141
    %v207 = vunpack.c.l.b16 %v142
    %v208 = vpack.c.b16 %v177, %v176
    %v209 = vpack.c.b16 %v179, %v178
    %v210 = vpack.c.b16 %v181, %v180
    %v211 = vpack.c.b16 %v183, %v182
    %v212 = vpack.c.b16 %v185, %v184
    %v213 = vpack.c.b16 %v187, %v186
    %v214 = vpack.c.b16 %v189, %v188
    %v215 = vpack.c.b16 %v191, %v190
    %v216 = vpack.c.b16 %v193, %v192
    %v217 = vpack.c.b16 %v195, %v194
    %v218 = vpack.c.b16 %v197, %v196
    %v219 = vpack.c.b16 %v199, %v198
    %v220 = vpack.c.b16 %v201, %v200
    %v221 = vpack.c.b16 %v203, %v202
    %v222 = vpack.c.b16 %v205, %v204
    %v223 = vpack.c.b16 %v207, %v206
    %240 = vmatprep.subr.bf16.mxu0 0
    %241 = vmatpush1.bf16.msra.mxu0 %v215
    %242 = vmatprep.subr.bf16.mxu0 0
    %243 = vmatpush1.bf16.msra.mxu0 %v214
    %244 = vmatprep.subr.bf16.mxu0 0
    %245 = vmatpush1.bf16.msra.mxu0 %v213
    %246 = vmatprep.subr.bf16.mxu0 0
    %247 = vmatpush1.bf16.msra.mxu0 %v212
    %248 = vmatprep.subr.bf16.mxu0 0
    %249 = vmatpush1.bf16.msra.mxu0 %v211
    %250 = vmatprep.subr.bf16.mxu0 0
    %251 = vmatpush1.bf16.msra.mxu0 %v210
    %252 = vmatprep.subr.bf16.mxu0 0
    %253 = vmatpush1.bf16.msra.mxu0 %v209
    %254 = vmatprep.subr.bf16.mxu0 0
    %255 = vmatpush1.bf16.msra.mxu0 %v208
    %256 = vmatprep.subr.bf16.mxu0 0
    %257 = vmatpush2.bf16.msra.mxu0 %v223
    %258 = vmatprep.subr.bf16.mxu0 0
    %259 = vmatpush2.bf16.msra.mxu0 %v222
    %260 = vmatprep.subr.bf16.mxu0 0
    %261 = vmatpush2.bf16.msra.mxu0 %v221
    %262 = vmatprep.subr.bf16.mxu0 0
    %263 = vmatpush2.bf16.msra.mxu0 %v220
    %264 = vmatprep.subr.bf16.mxu0 0
    %265 = vmatpush2.bf16.msra.mxu0 %v219
    %266 = vmatprep.subr.bf16.mxu0 0
    %267 = vmatpush2.bf16.msra.mxu0 %v218
    %268 = vmatprep.subr.bf16.mxu0 0
    %269 = vmatpush2.bf16.msra.mxu0 %v217
    %270 = vmatprep.subr.bf16.mxu0 0
    %271 = vmatpush2.bf16.msra.mxu0 %v216
    %272 = vmatprep.mubr.bf16.mxu0 %v110
    %273 = vmatmul.mubr.bf16.gmra.mxu0 %v109
    %v274 = vpop.f32.mrf.mxu0
    %v275 = vadd.f32 %v143, %v274
    %v276 = vpop.f32.mrf.mxu0
    %v277 = vpop.f32.mrf.mxu0
    %v278 = vpop.f32.mrf.mxu0
    %279 = vdwg.mxu0
    %v280 = vmax.f32 %v275, 0.0
    %v281 = vpack.c.bf16 %v280, %v280
    %v282 = vld [vmem:[%s4] sm:$0xf]
    %v283 = vld [vmem:[%s4 + $0x4] sm:$0xf]
    %v284 = vld [vmem:[%s4 + $0x8] sm:$0xf]
    %v285 = vld [vmem:[%s4 + $0xc] sm:$0xf]
    %v286 = vld [vmem:[%s4 + $0x10] sm:$0xf]
    %v287 = vld [vmem:[%s4 + $0x14] sm:$0xf]
    %v288 = vld [vmem:[%s4 + $0x18] sm:$0xf]
    %v289 = vld [vmem:[%s4 + $0x1c] sm:$0xf]
    %v290 = vld [vmem:[%s4 + $0x20] sm:$0xf]
    %v291 = vld [vmem:[%s4 + $0x24] sm:$0xf]
    %v292 = vld [vmem:[%s4 + $0x28] sm:$0xf]
    %v293 = vld [vmem:[%s4 + $0x2c] sm:$0xf]
    %v294 = vld [vmem:[%s4 + $0x30] sm:$0xf]
    %v295 = vld [vmem:[%s4 + $0x34] sm:$0xf]
    %v296 = vld [vmem:[%s4 + $0x38] sm:$0xf]
    %v297 = vld [vmem:[%s4 + $0x3c] sm:$0xf]
    %v298 = vld [vmem:[%s5] sm:$0x1]
    %v315 = vunpack.c.l.b16 %v282
    %v316 = vunpack.c.l.b16 %v283
    %v317 = vunpack.c.l.b16 %v284
    %v318 = vunpack.c.l.b16 %v285
    %v319 = vunpack.c.l.b16 %v286
    %v320 = vunpack.c.l.b16 %v287
    %v321 = vunpack.c.l.b16 %v288
    %v322 = vunpack.c.l.b16 %v289
    %v323 = vunpack.c.l.b16 %v290
    %v324 = vunpack.c.l.b16 %v291
    %v325 = vunpack.c.l.b16 %v292
    %v326 = vunpack.c.l.b16 %v293
    %v327 = vunpack.c.l.b16 %v294
    %v328 = vunpack.c.l.b16 %v295
    %v329 = vunpack.c.l.b16 %v296
    %v330 = vunpack.c.l.b16 %v297
    %v331 = vpack.c.b16 %v316, %v315
    %v332 = vpack.c.b16 %v318, %v317
    %v333 = vpack.c.b16 %v320, %v319
    %v334 = vpack.c.b16 %v322, %v321
    %v335 = vpack.c.b16 %v324, %v323
    %v336 = vpack.c.b16 %v326, %v325
    %v337 = vpack.c.b16 %v328, %v327
    %v338 = vpack.c.b16 %v330, %v329
    %347 = vmatprep.subr.bf16.mxu0 0
    %348 = vmatpush1.bf16.msra.mxu0 %v338
    %349 = vmatprep.subr.bf16.mxu0 0
    %350 = vmatpush1.bf16.msra.mxu0 %v337
    %351 = vmatprep.subr.bf16.mxu0 0
    %352 = vmatpush1.bf16.msra.mxu0 %v336
    %353 = vmatprep.subr.bf16.mxu0 0
    %354 = vmatpush1.bf16.msra.mxu0 %v335
    %355 = vmatprep.subr.bf16.mxu0 0
    %356 = vmatpush1.bf16.msra.mxu0 %v334
    %357 = vmatprep.subr.bf16.mxu0 0
    %358 = vmatpush1.bf16.msra.mxu0 %v333
    %359 = vmatprep.subr.bf16.mxu0 0
    %360 = vmatpush1.bf16.msra.mxu0 %v332
    %361 = vmatprep.subr.bf16.mxu0 0
    %362 = vmatpush1.bf16.msra.mxu0 %v331
    %363 = vmatprep.subr.bf16.mxu0 0
    %364 = vmatpush2.bf16.msra.mxu0 0
    %365 = vmatprep.subr.bf16.mxu0 0
    %366 = vmatpush2.bf16.msra.mxu0 0
    %367 = vmatprep.subr.bf16.mxu0 0
    %368 = vmatpush2.bf16.msra.mxu0 0
    %369 = vmatprep.subr.bf16.mxu0 0
    %370 = vmatpush2.bf16.msra.mxu0 0
    %371 = vmatprep.subr.bf16.mxu0 0
    %372 = vmatpush2.bf16.msra.mxu0 0
    %373 = vmatprep.subr.bf16.mxu0 0
    %374 = vmatpush2.bf16.msra.mxu0 0
    %375 = vmatprep.subr.bf16.mxu0 0
    %376 = vmatpush2.bf16.msra.mxu0 0
    %377 = vmatprep.subr.bf16.mxu0 0
    %378 = vmatpush2.bf16.msra.mxu0 0
    %379 = vmatprep.mubr.bf16.mxu0 0
    %380 = vmatmul.mubr.bf16.gmra.mxu0 %v281
    %v381 = vpop.f32.mrf.mxu0
    %v382 = vadd.f32 %v298, %v381
    %v383 = vpop.f32.mrf.mxu0
    %v384 = vpop.f32.mrf.mxu0
    %v385 = vpop.f32.mrf.mxu0
    %386 = vdwg.mxu0
    %vm387 = vcmask 1040384
    %v388 = vsel %vm387, %v382, -inf
    %389 = vmax.xlane.f32.xlu0 %v388
    %v390 = vpop.xlane.xlu0 %389
    %v391 = vsub.f32 %v382, %v390
    %v392 = vmul.f32 %v391, 1.442695
    %v393 = vpow.pop %v392
    %v394 = vsel %vm387, %v393, 0.0
    %395 = vadd.xlane.f32.xlu0 %v394
    %v396 = vpop.xlane.xlu0 %395
    %v397 = vlog2.pop %v396
    %v398 = vmul.f32 %v397, 0.6931472
    %v399 = vadd.f32 %v398, %v390
    %v400 = vsub.f32 %v382, %v399
    %401 = vst [vmem:[#allocation7] sm:$0x1] %v400
    // Predicated region
    $region34: #{tpu_custom_call.1} parent=1 // pred_check
      _
    $region35: #{tpu_custom_call.1} parent=1 // pred_check_branch
      %403 = sbr.rel (0) target = $region37
    $region36: #{tpu_custom_call.1} parent=1 // pred_region
      %s405 = ssub.s32 16, 16
      %406 = vsyncadd [#allocation4], %s405
      %s408 = sshll.u32 [#allocation7], 4
      %s409 = int_to_ptr.vmem [resolvable:$true] %s408
      %411 = dma.vmem_to_hbm [thread:$0]  %s409, 16, %s6, [#allocation4]
    $region37: #{tpu_custom_call.1} parent=1 // pred_fallthru
      _
    // Predicated region
    $region38: #{tpu_custom_call.1} parent=1 // pred_check
      _
    $region39: #{tpu_custom_call.1} parent=1 // pred_check_branch
      %413 = sbr.rel (0) target = $region41
    $region40: #{tpu_custom_call.1} parent=1 // pred_region
      %414 = dma.done [#allocation4], 16
    $region41: #{tpu_custom_call.1} parent=1 // pred_fallthru
      _
    %415 = vsyncpa [#allocation3], 1
    %416 = vsyncpa [#allocation4], 1
    %417 = vsyncpa [#allocation5], 1

</llo_original>
